<compile_context>
chip_gen: v6e
topology: v6e:2x2x1
jax: 0.10.0
libtpu: 0.0.40
codegen_flags: <defaults>
</compile_context>

<pallas_src>
import functools

import jax
import jax.numpy as jnp
from jax.experimental import pallas as pl
from jax.experimental.pallas import tpu as pltpu

_EPS = 1e-5


def _entropy_kernel(x_ref, o_ref, *, tile_rows: int, num_tiles: int,
                    last_valid_rows: int, exact_eps: bool):
    x = x_ref[...].astype(jnp.float32)                 # (tm, C)
    m = jnp.max(x, axis=-1, keepdims=True)             # stable softmax
    xm = x - m
    e = jnp.exp(xm)                                    # one full-width EUP pass
    s = jnp.sum(e, axis=-1, keepdims=True)             # (tm, 1)
    inv_s = 1.0 / s                                    # one divide per row

    if exact_eps:
        # Exact PyTorch parity: ent = -sum p * log(p + 1e-5).  Costs a second
        # full-width EUP (log) pass; negate once per row, not per element.
        p = e * inv_s
        ent = -jnp.sum(p * jnp.log(p + _EPS), axis=-1, keepdims=True)
    else:
        # Log-sum-exp identity (drops the +1e-5):
        #   -sum p*log p = log(s) - sum((x-m)*e)/s
        # Only per-row logs remain -> half the EUP transcendental pushes.
        w = jnp.sum(xm * e, axis=-1, keepdims=True)
        ent = jnp.log(s) - w * inv_s

    def _write(rows):
        # Lane-dense (1, 128) block: broadcast the partial so the store is a
        # full unmasked vst; the wrapper reads lane 0 of every tile.
        o_ref[...] = jnp.full(o_ref.shape, jnp.sum(rows), jnp.float32)

    if last_valid_rows == tile_rows:
        # No padded rows anywhere: no masking code emitted at all.
        _write(ent)
    else:
        i = pl.program_id(0)
        last = num_tiles - 1

        @pl.when(i == last)
        def _():
            # Only the final tile contains padded rows; mask them here so the
            # mean stays unbiased.  All other grid steps skip this entirely.
            local = jax.lax.broadcasted_iota(jnp.int32, (tile_rows, 1), 0)
            _write(jnp.where(local < last_valid_rows, ent, 0.0))

        @pl.when(i != last)
        def _():
            _write(ent)


def _sublane_multiple(itemsize: int) -> int:
    if itemsize >= 4:
        return 8
    if itemsize == 2:
        return 16
    return 32


def _vmem_budgets():
    """Returns (target_block_bytes, vmem_limit_bytes), generation-aware."""
    vmem_cap = None
    try:
        vmem_cap = pltpu.get_tpu_info().vmem_capacity_bytes
    except Exception:
        vmem_cap = None
    if vmem_cap is not None and vmem_cap >= 96 * 1024 * 1024:
        # v5e / v6e: 128 MiB VMEM -> bigger blocks, higher scoped limit.
        return 8 * 1024 * 1024, 64 * 1024 * 1024
    # v7x (64 MiB per TensorCore) or unknown: stay conservative so the
    # double-buffered input block + ~4 f32 temporaries never spill / OOM.
    return 4 * 1024 * 1024, 48 * 1024 * 1024


def _choose_tile_rows(n: int, c: int, itemsize: int,
                      target_block_bytes: int, max_rows: int = 32768) -> int:
    """Largest byte-budgeted row tile respecting the dtype sublane multiple."""
    sublane = _sublane_multiple(itemsize)
    rows = max(1, target_block_bytes // max(1, c * itemsize))
    rows = min(rows, max_rows)
    n_ceil = -(-n // sublane) * sublane            # n rounded up to sublane
    rows = min(rows, n_ceil)
    rows = max(sublane, (rows // sublane) * sublane)
    return rows


def _entropy_loss_ref(logits: jax.Array) -> jax.Array:
    """Pure-JAX reference matching the PyTorch semantics (with +1e-5)."""
    p = jax.nn.softmax(logits.astype(jnp.float32), axis=-1)
    loss = jnp.sum(-p * jnp.log(p + _EPS), axis=1)
    return jnp.mean(loss)


def _entropy_loss_ref_noeps(logits: jax.Array) -> jax.Array:
    """Eps-free reference (matches the LSE fast path mathematically)."""
    p = jax.nn.softmax(logits.astype(jnp.float32), axis=-1)
    loss = jnp.sum(-p * jnp.log(p), axis=1)
    return jnp.mean(loss)


def entropy_loss(logits: jax.Array, *, exact_eps: bool = True) -> jax.Array:
    """Pallas TPU implementation of the PyTorch entropy_loss.forward.

    exact_eps=True  : exact -sum p*log(p + 1e-5) semantics (default).
    exact_eps=False : log-sum-exp rewrite (drops the +1e-5); ~half the EUP work.
    """
    assert logits.ndim == 2, "entropy_loss expects (batch, classes) logits"
    n, c = logits.shape
    if n == 0:
        # PyTorch branch: size == 0 -> loss = 0.0 (mean of 0.0 scalar)
        return jnp.float32(0.0)

    itemsize = jnp.dtype(logits.dtype).itemsize
    target_block_bytes, vmem_limit_bytes = _vmem_budgets()
    sublane = _sublane_multiple(itemsize)

    # Huge C: even a minimum-height block (double-buffered input + ~4 f32
    # temporaries) would not fit the VMEM budget -> don't fail at compile time.
    # TODO(synk): add a class-tiled / online-LSE kernel for huge-vocab logits.
    min_block_bytes = sublane * c * (2 * itemsize + 4 * 4)
    if min_block_bytes > vmem_limit_bytes:
        return _entropy_loss_ref(logits)

    tm = _choose_tile_rows(n, c, itemsize, target_block_bytes)

    # Pad rows up to a multiple of the tile; padded rows are masked (only in
    # the final tile, only when padding actually exists).
    n_pad = -(-n // tm) * tm
    if n_pad != n:
        logits = jnp.pad(logits, ((0, n_pad - n), (0, 0)))
    num_tiles = n_pad // tm
    last_valid_rows = n - (num_tiles - 1) * tm

    kernel = functools.partial(
        _entropy_kernel, tile_rows=tm, num_tiles=num_tiles,
        last_valid_rows=last_valid_rows, exact_eps=exact_eps)

    # TODO(synk): for production shapes with C < 128, a class-major (C, N)
    # layout (or folding 128//C rows per lane-row) would use all 128 lanes;
    # kept the natural layout here since the kernel is HBM-streaming.
    partials = pl.pallas_call(
        kernel,
        out_shape=jax.ShapeDtypeStruct((num_tiles, 128), jnp.float32),
        grid_spec=pltpu.PrefetchScalarGridSpec(
            num_scalar_prefetch=0,
            grid=(num_tiles,),
            in_specs=[pl.BlockSpec((tm, c), lambda i: (i, 0))],
            out_specs=pl.BlockSpec((1, 128), lambda i: (i, 0)),
        ),
        compiler_params=pltpu.CompilerParams(
            dimension_semantics=("parallel",),   # shards across v7x's 2 TCs
            vmem_limit_bytes=vmem_limit_bytes,
        ),
    )(logits)

    # Tiny final reduction outside the kernel (num_tiles scalars).
    return jnp.sum(partials[:, 0]) / jnp.float32(n)


if __name__ == "__main__":
    key = jax.random.PRNGKey(0)
    # small shape consistent with the module: batch of 16 logit rows, 32 classes
    logits = jax.random.normal(key, (16, 32), dtype=jnp.float32)

    # Exact (+1e-5) path: PyTorch-parity semantics.
    out = jax.block_until_ready(entropy_loss(logits))
    ref = jax.block_until_ready(_entropy_loss_ref(logits))
    assert jnp.allclose(out, ref, rtol=1e-5, atol=1e-5), (out, ref)

    # Non-divisible batch -> exercises the pl.when-gated padding mask.
    logits2 = jax.random.normal(jax.random.PRNGKey(1), (13, 32), jnp.float32)
    out2 = jax.block_until_ready(entropy_loss(logits2))
    ref2 = jax.block_until_ready(_entropy_loss_ref(logits2))
    assert jnp.allclose(out2, ref2, rtol=1e-5, atol=1e-5), (out2, ref2)

    # Fast LSE path (drops the +1e-5): exact vs. the eps-free reference, and
    # within ~C*eps of the PyTorch-exact value.
    out3 = jax.block_until_ready(entropy_loss(logits, exact_eps=False))
    ref3 = jax.block_until_ready(_entropy_loss_ref_noeps(logits))
    assert jnp.allclose(out3, ref3, rtol=1e-4, atol=1e-4), (out3, ref3)
    assert jnp.allclose(out3, ref, atol=32 * 1.5e-5), (out3, ref)

    # bf16 input stays bf16 in HBM (sublane multiple 16); math is f32 in-kernel.
    logits4 = jax.random.normal(jax.random.PRNGKey(2), (16, 32)).astype(jnp.bfloat16)
    out4 = jax.block_until_ready(entropy_loss(logits4))
    ref4 = jax.block_until_ready(_entropy_loss_ref(logits4))
    assert jnp.allclose(out4, ref4, rtol=1e-4, atol=1e-4), (out4, ref4)

    print("KERNEL_OK")
</pallas_src>

<mosaic_0001>
module attributes {stable_mosaic.version = 11 : i64} {
  func.func @_entropy_kernel(%arg0: i32, %arg1: memref<16x32xf32, #tpu.memory_space<vmem>>, %arg2: memref<1x128xf32, #tpu.memory_space<vmem>>) attributes {dimension_semantics = [#tpu.dimension_semantics<parallel>], iteration_bounds = array<i64: 1>, scalar_prefetch = 0 : i64, scratch_operands = 0 : i64, tpu.core_type = #tpu.core_type<tc>, window_params = [{transform_indices = @transform_0, window_bounds = array<i64: 16, 32>}, {transform_indices = @transform_1, window_bounds = array<i64: 1, 128>}]} {
    %c0 = arith.constant 0 : index
    %c0_0 = arith.constant 0 : index
    %0 = vector.load %arg1[%c0, %c0_0] : memref<16x32xf32, #tpu.memory_space<vmem>>, vector<16x32xf32>
    %cst = arith.constant dense<0xFF800000> : vector<16xf32>
    %1 = vector.multi_reduction <maximumf>, %0, %cst [1] : vector<16x32xf32> to vector<16xf32>
    %2 = vector.shape_cast %1 : vector<16xf32> to vector<16x1xf32>
    %3 = vector.broadcast %2 : vector<16x1xf32> to vector<16x32xf32>
    %4 = arith.subf %0, %3 : vector<16x32xf32>
    %5 = math.exp %4 : vector<16x32xf32>
    %cst_1 = arith.constant dense<0.000000e+00> : vector<16xf32>
    %6 = vector.multi_reduction <add>, %5, %cst_1 [1] : vector<16x32xf32> to vector<16xf32>
    %7 = vector.shape_cast %6 : vector<16xf32> to vector<16x1xf32>
    %cst_2 = arith.constant 1.000000e+00 : f32
    %8 = vector.broadcast %cst_2 : f32 to vector<16x1xf32>
    %9 = arith.divf %8, %7 : vector<16x1xf32>
    %10 = vector.broadcast %9 : vector<16x1xf32> to vector<16x32xf32>
    %11 = arith.mulf %5, %10 : vector<16x32xf32>
    %cst_3 = arith.constant 9.99999974E-6 : f32
    %12 = vector.broadcast %cst_3 : f32 to vector<16x32xf32>
    %13 = arith.addf %11, %12 : vector<16x32xf32>
    %14 = math.log %13 : vector<16x32xf32>
    %15 = arith.mulf %11, %14 : vector<16x32xf32>
    %cst_4 = arith.constant dense<0.000000e+00> : vector<16xf32>
    %16 = vector.multi_reduction <add>, %15, %cst_4 [1] : vector<16x32xf32> to vector<16xf32>
    %17 = vector.shape_cast %16 : vector<16xf32> to vector<16x1xf32>
    %cst_5 = arith.constant 0.000000e+00 : f32
    %18 = vector.broadcast %cst_5 : f32 to vector<16x1xf32>
    %19 = arith.subf %18, %17 : vector<16x1xf32>
    %20 = vector.shape_cast %19 : vector<16x1xf32> to vector<1x16x1xf32>
    %cst_6 = arith.constant dense<0.000000e+00> : vector<1xf32>
    %21 = vector.multi_reduction <add>, %20, %cst_6 [1, 2] : vector<1x16x1xf32> to vector<1xf32>
    %22 = vector.shape_cast %21 : vector<1xf32> to vector<1x1x1xf32>
    %23 = vector.extract %22[0, 0, 0] : f32 from vector<1x1x1xf32>
    %24 = vector.broadcast %23 : f32 to vector<1x128xf32>
    %c0_7 = arith.constant 0 : index
    %c0_8 = arith.constant 0 : index
    %25 = vector.load %arg2[%c0_7, %c0_8] : memref<1x128xf32, #tpu.memory_space<vmem>>, vector<1x128xf32>
    tpu.vector_store %arg2[%c0_7, %c0_8], %24 {strides = array<i32>} : memref<1x128xf32, #tpu.memory_space<vmem>>, vector<1x128xf32>,
    return
  }
  func.func @transform_0(%arg0: i32) -> (i32, i32) {
    %c0_i32 = arith.constant 0 : i32
    %c0_i32_0 = arith.constant 0 : i32
    return %arg0, %c0_i32 : i32, i32
  }
  func.func @transform_1(%arg0: i32) -> (i32, i32) {
    %c0_i32 = arith.constant 0 : i32
    %c0_i32_0 = arith.constant 0 : i32
    return %arg0, %c0_i32 : i32, i32
  }
}

</mosaic_0001>

<llo_original>
// kernel: tpu_custom_call.1
$region0: #{tpu_custom_call.1}
  #allocation0 [shape = 'u32[]', space=smem, size = 0x4, offset = 0x4, fixed_abs, tag = 'smem constant byte address 0x4 - core index']
  #allocation1 [shape = 'u32[144,128]{1,0:T(1,128)}', space=vmem, size = 0x12000, scoped, tag = 'internal scratch']
  %s0 = inlined_call_operand.hbm [shape: f32[16,32], index: 0, kind: input, shape index: {}]
  %s1 = inlined_call_operand.hbm [shape: f32[1,128], index: 1, kind: output, shape index: {}]
  %s2 = sld [smem:[#allocation0]]
  $region18: #{tpu_custom_call.1} parent=0
    _
  %s4 = ssub.s32 1, %s2
  %s5 = scalar_select 0, %s4, %s2
  $region1: #{tpu_custom_call.1} parent=0
    #allocation2 [shape = 'u8[8192]{0}', space=vmem, size = 0x2000, scoped, tag = 'input window, operand 0, single buffered']
    #allocation3 [shape = 's32[1]{0}', space=sflag, size = 0x4, scoped, tag = 'scoped memory for tpu_custom_call.1']
    #allocation4 [shape = 's32[1]{0}', space=sflag, size = 0x4, scoped, tag = 'scoped memory for tpu_custom_call.1']
    #allocation5 [shape = 'u8[512]{0}', space=vmem, size = 0x400, scoped, tag = 'output window, operand 0, single buffered']
    %6 = vsyncpa [#allocation3], 0
    %7 = vsyncpa [#allocation4], 0
    // Predicated region
    $region2: #{tpu_custom_call.1} parent=1 // pred_check
      _
    $region3: #{tpu_custom_call.1} parent=1 // pred_check_branch
      %9 = sbr.rel (0) target = $region5
    $region4: #{tpu_custom_call.1} parent=1 // pred_region
      %s11 = ssub.s32 256, 256
      %12 = vsyncadd [#allocation3], %s11
      %s13 = sshll.u32 [#allocation2], 4
      %s14 = int_to_ptr.vmem [resolvable:$true] %s13
      %19 = dma.hbm_to_vmem [thread:$0]  %s0, 256, %s14, [#allocation3], 128, 128, 8
    $region5: #{tpu_custom_call.1} parent=1 // pred_fallthru
      _
    // Predicated region
    $region6: #{tpu_custom_call.1} parent=1 // pred_check
      _
    $region7: #{tpu_custom_call.1} parent=1 // pred_check_branch
      %21 = sbr.rel (0) target = $region9
    $region8: #{tpu_custom_call.1} parent=1 // pred_region
      %22 = dma.done [#allocation3], 256
    $region9: #{tpu_custom_call.1} parent=1 // pred_fallthru
      _
    %v23 = vld [vmem:[#allocation2] sm:$0xff]
    %v24 = vld [vmem:[#allocation2 + $0x8] sm:$0xff]
    %vm25 = vcmask 261120
    %v26 = vsel %vm25, %v23, -inf
    %27 = vmax.xlane.f32.xlu0 %v26
    %v28 = vpop.xlane.xlu0 %27
    %v29 = vsel %vm25, %v24, -inf
    %30 = vmax.xlane.f32.xlu0 %v29
    %v31 = vpop.xlane.xlu0 %30
    %v32 = vsub.f32 %v23, %v28
    %v33 = vsub.f32 %v24, %v31
    %v34 = vmul.f32 %v32, 1.442695
    %v35 = vpow.pop %v34
    %v36 = vmul.f32 %v33, 1.442695
    %v37 = vpow.pop %v36
    %v38 = vsel %vm25, %v35, 0.0
    %39 = vadd.xlane.f32.xlu0 %v38
    %v40 = vpop.xlane.xlu0 %39
    %v41 = vsel %vm25, %v37, 0.0
    %42 = vadd.xlane.f32.xlu0 %v41
    %v43 = vpop.xlane.xlu0 %42
    %v44 = vrcp.pop %v40
    %v45 = vmul.f32 1.0, %v44
    %v46 = vrcp.pop %v43
    %v47 = vmul.f32 1.0, %v46
    %v48 = vmul.f32 %v35, %v45
    %v49 = vmul.f32 %v37, %v47
    %v50 = vadd.f32 %v48, 1e-05
    %v51 = vadd.f32 %v49, 1e-05
    %v52 = vlog2.pop %v50
    %v53 = vmul.f32 %v52, 0.6931472
    %v54 = vlog2.pop %v51
    %v55 = vmul.f32 %v54, 0.6931472
    %v56 = vmul.f32 %v48, %v53
    %v57 = vmul.f32 %v49, %v55
    %v58 = vsel %vm25, %v56, 0.0
    %59 = vadd.xlane.f32.xlu0 %v58
    %v60 = vpop.xlane.xlu0 %59
    %v61 = vsel %vm25, %v57, 0.0
    %62 = vadd.xlane.f32.xlu0 %v61
    %v63 = vpop.xlane.xlu0 %62
    %v64 = vsub.f32 0.0, %v60
    %v65 = vsub.f32 0.0, %v63
    %vm66 = vcmask 7168
    %v67 = vsel %vm66, %v64, 0.0
    %v68 = vsel %vm66, %v65, 0.0
    %v69 = vadd.f32 %v67, %v68
    %70 = vadd.xlane.f32.xlu0 %v69
    %v71 = vpop.xlane.xlu0 %70
    %v72 = vrot.slane %v71, 4
    %v73 = vadd.f32 %v71, %v72
    %v74 = vrot.slane %v73, 2
    %v75 = vadd.f32 %v73, %v74
    %v76 = vrot.slane %v75, 1
    %v77 = vadd.f32 %v75, %v76
    %s78 = vtos %v77
    %v79 = vstv %s78
    %80 = vst [vmem:[#allocation5] sm:$0x1] %v79
    // Predicated region
    $region10: #{tpu_custom_call.1} parent=1 // pred_check
      _
    $region11: #{tpu_custom_call.1} parent=1 // pred_check_branch
      %82 = sbr.rel (0) target = $region13
    $region12: #{tpu_custom_call.1} parent=1 // pred_region
      %s84 = ssub.s32 16, 16
      %85 = vsyncadd [#allocation4], %s84
      %s87 = sshll.u32 [#allocation5], 4
      %s88 = int_to_ptr.vmem [resolvable:$true] %s87
      %90 = dma.vmem_to_hbm [thread:$0]  %s88, 16, %s1, [#allocation4]
    $region13: #{tpu_custom_call.1} parent=1 // pred_fallthru
      _
    // Predicated region
    $region14: #{tpu_custom_call.1} parent=1 // pred_check
      _
    $region15: #{tpu_custom_call.1} parent=1 // pred_check_branch
      %92 = sbr.rel (0) target = $region17
    $region16: #{tpu_custom_call.1} parent=1 // pred_region
      %93 = dma.done [#allocation4], 16
    $region17: #{tpu_custom_call.1} parent=1 // pred_fallthru
      _
    %94 = vsyncpa [#allocation3], 1
    %95 = vsyncpa [#allocation4], 1

</llo_original>
